<compile_context>
chip_gen: v7x
topology: tpu7x:2x2x1
jax: 0.10.0
libtpu: 0.0.40
codegen_flags: <defaults>
</compile_context>

<pallas_src>
import functools
import inspect
import math

import jax
import jax.numpy as jnp
from jax.experimental import pallas as pl
from jax.experimental.pallas import tpu as pltpu

_GELU_C = math.sqrt(2.0 / math.pi)


def _gelu(h):
    """tanh-GELU, exactly the PyTorch formula; explicit muls (no pow)."""
    h_sq = h * h
    inner = (_GELU_C * h) * (1.0 + 0.044715 * h_sq)
    return (0.5 * h) * (1.0 + jnp.tanh(inner))


# --------------------------------------------------------------------------
# Kernels
# --------------------------------------------------------------------------
def _resident_kernel(n_chunks, hc, x_ref, w1_ref, b1_ref, w2_ref, b2_ref, o_ref):
    """Weights fully VMEM-resident; hidden dim chunked inside the kernel.

    No accumulator scratch and no reduction grid axis: both matmuls, bias adds
    and the GELU are fused and the result is written straight into o_ref.
    The per-chunk f32 temporaries are bounded to (tm, hc).
    """
    x = x_ref[...]
    acc = jnp.zeros(o_ref.shape, jnp.float32)
    for c in range(n_chunks):  # static unroll; dep-chain through acc bounds live temps
        lo = c * hc
        h = jnp.dot(x, w1_ref[:, lo:lo + hc], preferred_element_type=jnp.float32)
        h = h + b1_ref[:, lo:lo + hc].astype(jnp.float32)
        g = _gelu(h)
        acc = acc + jnp.dot(g.astype(w2_ref.dtype), w2_ref[lo:lo + hc, :],
                            preferred_element_type=jnp.float32)
    o_ref[...] = (acc + b2_ref[...].astype(jnp.float32)).astype(o_ref.dtype)


def _streamed_kernel_f32(x_ref, w1_ref, b1_ref, w2_ref, b2_ref, o_ref):
    """Streamed hidden slices, f32 output: accumulate directly into o_ref."""
    j = pl.program_id(1)

    @pl.when(j == 0)
    def _init():
        o_ref[...] = jnp.zeros_like(o_ref)

    h = jnp.dot(x_ref[...], w1_ref[...], preferred_element_type=jnp.float32)
    h = h + b1_ref[...].astype(jnp.float32)
    g = _gelu(h)
    o_ref[...] += jnp.dot(g.astype(w2_ref.dtype), w2_ref[...],
                          preferred_element_type=jnp.float32)

    @pl.when(j == pl.num_programs(1) - 1)
    def _finalize():
        o_ref[...] += b2_ref[...].astype(jnp.float32)


def _streamed_kernel_acc(x_ref, w1_ref, b1_ref, w2_ref, b2_ref, o_ref, acc_ref):
    """Streamed hidden slices, non-f32 output: f32 scratch accumulator."""
    j = pl.program_id(1)

    @pl.when(j == 0)
    def _init():
        acc_ref[...] = jnp.zeros_like(acc_ref)

    h = jnp.dot(x_ref[...], w1_ref[...], preferred_element_type=jnp.float32)
    h = h + b1_ref[...].astype(jnp.float32)
    g = _gelu(h)
    acc_ref[...] += jnp.dot(g.astype(w2_ref.dtype), w2_ref[...],
                            preferred_element_type=jnp.float32)

    @pl.when(j == pl.num_programs(1) - 1)
    def _finalize():
        o_ref[...] = (acc_ref[...] + b2_ref[...].astype(jnp.float32)
                      ).astype(o_ref.dtype)


# --------------------------------------------------------------------------
# Sizing helpers
# --------------------------------------------------------------------------
def _round_up(x, m):
    return ((x + m - 1) // m) * m


def _divisor_tile(n, candidates):
    for c in candidates:
        if c <= n and n % c == 0:
            return c
    return n


def _tpu_caps():
    """(physical_vmem_bytes, is_v5e) — best-effort hardware probe."""
    vmem = 128 * 1024 * 1024
    kind = ""
    try:
        kind = (jax.devices()[0].device_kind or "").lower()
    except Exception:  # hardware probe only; never gates correctness
        pass
    try:
        info = pltpu.get_tpu_info()
        vmem = int(getattr(info, "vmem_capacity_bytes", vmem)) or vmem
    except Exception:  # hardware probe only
        pass
    if "v7" in kind or "tpu7" in kind:  # v7x: 64 MiB per TensorCore
        vmem = min(vmem, 64 * 1024 * 1024)
    is_v5e = ("v5e" in kind) or ("v5 lite" in kind) or ("v5lite" in kind)
    return vmem, is_v5e


@functools.lru_cache(maxsize=None)
def _single_buffer_supported():
    """Trace-time capability check for BlockSpec(pipeline_mode=pl.Buffered(1)).

    A tiny dummy kernel is lowered + compiled once (never executed), so the
    real kernel needs no runtime fallback / try-except around pallas_call.
    """
    if not hasattr(pl, "Buffered"):
        return False
    try:
        if "pipeline_mode" not in inspect.signature(pl.BlockSpec).parameters:
            return False
    except (TypeError, ValueError):
        return False

    def _probe(x_ref, o_ref):
        o_ref[...] = x_ref[...]

    try:
        probe = pl.pallas_call(
            _probe,
            out_shape=jax.ShapeDtypeStruct((8, 128), jnp.float32),
            grid_spec=pltpu.PrefetchScalarGridSpec(
                num_scalar_prefetch=0,
                grid=(2,),
                in_specs=[pl.BlockSpec((8, 128), lambda i: (0, 0),
                                       pipeline_mode=pl.Buffered(1))],
                out_specs=pl.BlockSpec((8, 128), lambda i: (0, 0)),
            ),
        )
        jax.jit(probe).lower(jax.ShapeDtypeStruct((8, 128), jnp.float32)).compile()
        return True
    except Exception:
        return False


def _buffered_kwargs():
    return {"pipeline_mode": pl.Buffered(1)} if _single_buffer_supported() else {}


def _resident_bytes(tm, hc, nx, ns, act_isz, out_isz, w_isz, wbuf):
    return (2 * tm * nx * act_isz          # x tiles (double-buffered)
            + 2 * tm * nx * out_isz        # out tiles (double-buffered)
            + wbuf * 2 * nx * ns * w_isz   # W_fc + W_proj (resident)
            + wbuf * (ns + nx) * 4         # biases
            + tm * nx * 4                  # f32 accumulator value
            + 4 * tm * hc * 4)             # f32 GELU temporaries


def _streamed_bytes(tm, tk, nx, act_isz, out_isz, w_isz, f32_out):
    return (2 * tm * nx * act_isz
            + 2 * tm * nx * out_isz
            + (0 if f32_out else tm * nx * 4)   # acc scratch only for non-f32 out
            + 2 * 2 * nx * tk * w_isz           # W_fc / W_proj slices, double-buffered
            + 2 * 2 * (tk + nx) * 4             # bias slices
            + 4 * tm * tk * 4)                  # f32 GELU temporaries


# --------------------------------------------------------------------------
# Wrapper
# --------------------------------------------------------------------------
def mlp_pallas(x, w_fc, b_fc, w_proj, b_proj, *,
               weight_vmem_budget=None,
               max_hidden_tile=None,
               cast_inputs_to_bf16=False):
    """Fused GPT-2 MLP: gelu(x @ w_fc + b_fc) @ w_proj + b_proj, x: (B, T, nx)."""
    B, T, nx = x.shape
    n_state = w_fc.shape[1]
    assert w_fc.shape == (nx, n_state)
    assert w_proj.shape == (n_state, nx)
    assert b_fc.shape == (n_state,)
    assert b_proj.shape == (nx,)
    M = B * T
    out_dtype = x.dtype

    phys_vmem, is_v5e = _tpu_caps()
    vmem_cap = int(0.85 * phys_vmem)  # headroom for Mosaic scratch / DMA windows

    # Optional bf16 MXU fast path for f32 inputs (bias/GELU/accum stay f32).
    if cast_inputs_to_bf16 and x.dtype == jnp.float32:
        x = x.astype(jnp.bfloat16)
        w_fc = w_fc.astype(jnp.bfloat16)
        w_proj = w_proj.astype(jnp.bfloat16)

    act_isz = jnp.dtype(x.dtype).itemsize
    out_isz = jnp.dtype(out_dtype).itemsize
    w_isz = jnp.dtype(w_fc.dtype).itemsize

    # Zero-pad the hidden dim to a multiple of 128 (exact: gelu(0)-rows add 0).
    n_state_p = _round_up(n_state, 128)
    if n_state_p != n_state:
        pad = n_state_p - n_state
        w_fc = jnp.pad(w_fc, ((0, 0), (0, pad)))
        b_fc = jnp.pad(b_fc, ((0, pad),))
        w_proj = jnp.pad(w_proj, ((0, pad), (0, 0)))

    x2d = x.reshape(M, nx)
    b_fc2 = b_fc.reshape(1, n_state_p)
    b_proj2 = b_proj.reshape(1, nx)

    # Row tile: fill the MXU, but keep >= 2 row tiles whenever M allows so the
    # "parallel" axis spans both TensorCores on v7x.
    tm_resident_max = 256 if is_v5e else 512
    tm_streamed_max = 256 if is_v5e else 1024  # streamed weights need tall tiles
                                               # to clear the HBM roofline

    def _row_tile(tm_max):
        tm = min(tm_max, _round_up(M, 16))
        if _round_up(M, tm) // tm < 2 and tm > 16:
            tm = max(16, _round_up((M + 1) // 2, 16))
        return tm

    buffered_kw = _buffered_kwargs()
    wbuf = 1 if buffered_kw else 2  # budget resident weights consistently

    # ---------------- resident-weight path ----------------
    hc_cands = (512, 384, 256, 128)
    if max_hidden_tile is not None:
        hc_cands = tuple(c for c in hc_cands if c <= max_hidden_tile) or (128,)
    hc = _divisor_tile(n_state_p, hc_cands)
    tm_res = _row_tile(tm_resident_max)
    resident_weight_bytes = wbuf * (2 * nx * n_state_p * w_isz + (n_state_p + nx) * 4)
    wbudget = vmem_cap if weight_vmem_budget is None else int(weight_vmem_budget)
    resident_ok = (
        resident_weight_bytes <= wbudget
        and _resident_bytes(tm_res, hc, nx, n_state_p, act_isz, out_isz, w_isz,
                            wbuf) <= vmem_cap)

    if resident_ok:
        tm = tm_res
        M_pad = _round_up(M, tm)
        grid_m = M_pad // tm
        if M_pad != M:
            x2d = jnp.pad(x2d, ((0, M_pad - M), (0, 0)))
        n_chunks = n_state_p // hc

        kernel = functools.partial(_resident_kernel, n_chunks, hc)
        in_specs = [
            pl.BlockSpec((tm, nx), lambda i: (i, 0)),                        # x rows
            pl.BlockSpec((nx, n_state_p), lambda i: (0, 0), **buffered_kw),  # W_fc
            pl.BlockSpec((1, n_state_p), lambda i: (0, 0), **buffered_kw),   # b_fc
            pl.BlockSpec((n_state_p, nx), lambda i: (0, 0), **buffered_kw),  # W_proj
            pl.BlockSpec((1, nx), lambda i: (0, 0), **buffered_kw),          # b_proj
        ]
        out_spec = pl.BlockSpec((tm, nx), lambda i: (i, 0))
        grid = (grid_m,)
        dim_sem = ("parallel",)
        scratch = []
        weight_reads = 1
    else:
        # ---------------- streamed-weight path ----------------
        tk_cands = (512, 256, 384, 128)  # prefer multiples of 256 (MXU native)
        if max_hidden_tile is not None:
            tk_cands = tuple(c for c in tk_cands if c <= max_hidden_tile) or (128,)
        tk = _divisor_tile(n_state_p, tk_cands)
        f32_out = (out_dtype == jnp.float32)

        tm = _row_tile(tm_streamed_max)
        while (tm > 16 and
               _streamed_bytes(tm, tk, nx, act_isz, out_isz, w_isz, f32_out)
               > vmem_cap):
            tm = max(16, _round_up(tm // 2, 16))

        M_pad = _round_up(M, tm)
        grid_m = M_pad // tm
        grid_k = n_state_p // tk
        if M_pad != M:
            x2d = jnp.pad(x2d, ((0, M_pad - M), (0, 0)))

        in_specs = [
            pl.BlockSpec((tm, nx), lambda i, j: (i, 0)),   # x rows
            pl.BlockSpec((nx, tk), lambda i, j: (0, j)),   # W_fc slice
            pl.BlockSpec((1, tk), lambda i, j: (0, j)),    # b_fc slice
            pl.BlockSpec((tk, nx), lambda i, j: (j, 0)),   # W_proj slice
            pl.BlockSpec((1, nx), lambda i, j: (0, 0)),    # b_proj
        ]
        out_spec = pl.BlockSpec((tm, nx), lambda i, j: (i, 0))
        grid = (grid_m, grid_k)
        dim_sem = ("parallel", "arbitrary")
        if f32_out:
            kernel = _streamed_kernel_f32       # accumulate directly into o_ref
            scratch = []
        else:
            kernel = _streamed_kernel_acc       # f32 scratch, cast at the end
            scratch = [pltpu.VMEM((tm, nx), jnp.float32)]
        weight_reads = 1 if grid_k == 1 else grid_m

    cost = pl.CostEstimate(
        flops=int(4 * M_pad * nx * n_state_p),
        transcendentals=int(M_pad * n_state_p),
        bytes_accessed=int(M_pad * nx * act_isz + M_pad * nx * out_isz
                           + weight_reads * 2 * nx * n_state_p * w_isz
                           + (n_state_p + nx) * 4),
    )

    out2d = pl.pallas_call(
        kernel,
        out_shape=jax.ShapeDtypeStruct((M_pad, nx), out_dtype),
        grid_spec=pltpu.PrefetchScalarGridSpec(
            num_scalar_prefetch=0,
            grid=grid,
            in_specs=in_specs,
            out_specs=out_spec,
            scratch_shapes=scratch,
        ),
        compiler_params=pltpu.CompilerParams(
            dimension_semantics=dim_sem,
            vmem_limit_bytes=vmem_cap),
        cost_estimate=cost,
    )(x2d, w_fc, b_fc2, w_proj, b_proj2)

    return out2d[:M].reshape(B, T, nx)


def mlp_reference(x, w_fc, b_fc, w_proj, b_proj):
    """Pure-JAX f32 reference mirroring the PyTorch forward."""
    xf = x.astype(jnp.float32)
    h = jnp.einsum("btd,df->btf", xf, w_fc.astype(jnp.float32)) + b_fc.astype(jnp.float32)
    h = 0.5 * h * (1.0 + jnp.tanh(_GELU_C * (h + 0.044715 * h ** 3)))
    return jnp.einsum("btf,fd->btd", h, w_proj.astype(jnp.float32)) + b_proj.astype(jnp.float32)


if __name__ == "__main__":
    keys = jax.random.split(jax.random.PRNGKey(0), 2)

    def make_inputs(key, B, T, n_embd, n_state):
        kx, k1, k2, k3, k4 = jax.random.split(key, 5)
        x = jax.random.normal(kx, (B, T, n_embd), dtype=jnp.float32)
        w_fc = 0.02 * jax.random.normal(k1, (n_embd, n_state), dtype=jnp.float32)
        b_fc = 0.02 * jax.random.normal(k3, (n_state,), dtype=jnp.float32)
        w_proj = 0.02 * jax.random.normal(k2, (n_state, n_embd), dtype=jnp.float32)
        b_proj = 0.02 * jax.random.normal(k4, (n_embd,), dtype=jnp.float32)
        return x, w_fc, b_fc, w_proj, b_proj

    # Config 1: GPT-2-style tiny MLP (n_state = 4 * n_embd).
    B, T, n_embd = 2, 8, 32
    n_state = 4 * n_embd
    x, w_fc, b_fc, w_proj, b_proj = make_inputs(keys[0], B, T, n_embd, n_state)
    ref = mlp_reference(x, w_fc, b_fc, w_proj, b_proj)

    # (1) f32, resident-weight fused path.
    out = jax.block_until_ready(mlp_pallas(x, w_fc, b_fc, w_proj, b_proj))
    assert out.shape == (B, T, n_embd) and out.dtype == jnp.float32
    assert jnp.allclose(out, ref, atol=1e-5, rtol=1e-5), "f32 resident mismatch"

    # (2) bf16 inputs (bf16 MXU path; bias/GELU/accumulation in f32).
    out_bf16 = jax.block_until_ready(
        mlp_pallas(x.astype(jnp.bfloat16), w_fc.astype(jnp.bfloat16), b_fc,
                   w_proj.astype(jnp.bfloat16), b_proj))
    assert out_bf16.dtype == jnp.bfloat16
    assert jnp.allclose(out_bf16.astype(jnp.float32), ref, atol=3e-3, rtol=5e-2), \
        "bf16 mismatch"

    # (3) f32 inputs with the optional bf16-matmul fast path.
    out_cast = jax.block_until_ready(
        mlp_pallas(x, w_fc, b_fc, w_proj, b_proj, cast_inputs_to_bf16=True))
    assert out_cast.dtype == jnp.float32
    assert jnp.allclose(out_cast, ref, atol=3e-3, rtol=5e-2), "bf16-cast mismatch"

    # Config 2: exercises the chunked resident loop and the streamed path.
    B2, T2, n_embd2 = 2, 16, 64
    n_state2 = 4 * n_embd2  # 256
    x2, w_fc2, b_fc2, w_proj2, b_proj2 = make_inputs(keys[1], B2, T2, n_embd2, n_state2)
    ref2 = mlp_reference(x2, w_fc2, b_fc2, w_proj2, b_proj2)

    # (4) resident path with a multi-chunk inner hidden loop (hc=128, 2 chunks).
    out2 = jax.block_until_ready(
        mlp_pallas(x2, w_fc2, b_fc2, w_proj2, b_proj2, max_hidden_tile=128))
    assert jnp.allclose(out2, ref2, atol=1e-5, rtol=1e-5), "chunked resident mismatch"

    # (5) streamed path, f32 output (accumulates directly into o_ref), grid_k=2.
    out3 = jax.block_until_ready(
        mlp_pallas(x2, w_fc2, b_fc2, w_proj2, b_proj2,
                   weight_vmem_budget=1, max_hidden_tile=128))
    assert jnp.allclose(out3, ref2, atol=1e-5, rtol=1e-5), "f32 streamed mismatch"

    # (6) streamed path, bf16 output (f32 scratch accumulator), grid_k=2.
    out4 = jax.block_until_ready(
        mlp_pallas(x2.astype(jnp.bfloat16), w_fc2.astype(jnp.bfloat16), b_fc2,
                   w_proj2.astype(jnp.bfloat16), b_proj2,
                   weight_vmem_budget=1, max_hidden_tile=128))
    assert jnp.allclose(out4.astype(jnp.float32), ref2, atol=3e-3, rtol=5e-2), \
        "bf16 streamed mismatch"

    print("KERNEL_OK")
</pallas_src>

<mosaic_0001>
module attributes {stable_mosaic.version = 11 : i64} {
  func.func @_resident_kernel(%arg0: i32, %arg1: memref<16x32xf32, #tpu.memory_space<vmem>>, %arg2: memref<32x128xf32, #tpu.memory_space<vmem>>, %arg3: memref<1x128xf32, #tpu.memory_space<vmem>>, %arg4: memref<128x32xf32, #tpu.memory_space<vmem>>, %arg5: memref<1x32xf32, #tpu.memory_space<vmem>>, %arg6: memref<16x32xf32, #tpu.memory_space<vmem>>) attributes {dimension_semantics = [#tpu.dimension_semantics<parallel>], iteration_bounds = array<i64: 1>, scalar_prefetch = 0 : i64, scratch_operands = 0 : i64, tpu.core_type = #tpu.core_type<tc>, window_params = [{transform_indices = @transform_0, window_bounds = array<i64: 16, 32>}, {pipeline_mode = #tpu.pipeline_mode<synchronous>, transform_indices = @transform_1, window_bounds = array<i64: 32, 128>}, {pipeline_mode = #tpu.pipeline_mode<synchronous>, transform_indices = @transform_2, window_bounds = array<i64: 1, 128>}, {pipeline_mode = #tpu.pipeline_mode<synchronous>, transform_indices = @transform_3, window_bounds = array<i64: 128, 32>}, {pipeline_mode = #tpu.pipeline_mode<synchronous>, transform_indices = @transform_4, window_bounds = array<i64: 1, 32>}, {transform_indices = @transform_5, window_bounds = array<i64: 16, 32>}]} {
    %c0 = arith.constant 0 : index
    %c0_0 = arith.constant 0 : index
    %0 = vector.load %arg1[%c0, %c0_0] : memref<16x32xf32, #tpu.memory_space<vmem>>, vector<16x32xf32>
    %cst = arith.constant 0.000000e+00 : f32
    %1 = vector.broadcast %cst : f32 to vector<16x32xf32>
    %c0_1 = arith.constant 0 : index
    %c0_2 = arith.constant 0 : index
    %2 = vector.load %arg2[%c0_1, %c0_2] : memref<32x128xf32, #tpu.memory_space<vmem>>, vector<32x128xf32>
    %cst_3 = arith.constant dense<0.000000e+00> : vector<16x128xf32>
    %3 = tpu.matmul %0, %2, %cst_3 {dimension_numbers = #tpu.dot_dimension_numbers<[1], [0], [0], [1], [0, 0, 1, 1], [], []>} : vector<16x32xf32>, vector<32x128xf32>, vector<16x128xf32> -> vector<16x128xf32>
    %c0_4 = arith.constant 0 : index
    %c0_5 = arith.constant 0 : index
    %4 = vector.load %arg3[%c0_4, %c0_5] : memref<1x128xf32, #tpu.memory_space<vmem>>, vector<1x128xf32>
    %5 = vector.broadcast %4 : vector<1x128xf32> to vector<16x128xf32>
    %6 = arith.addf %3, %5 : vector<16x128xf32>
    %7 = arith.mulf %6, %6 : vector<16x128xf32>
    %cst_6 = arith.constant 0.797884583 : f32
    %8 = vector.broadcast %cst_6 : f32 to vector<16x128xf32>
    %9 = arith.mulf %8, %6 : vector<16x128xf32>
    %cst_7 = arith.constant 4.471500e-02 : f32
    %10 = vector.broadcast %cst_7 : f32 to vector<16x128xf32>
    %11 = arith.mulf %10, %7 : vector<16x128xf32>
    %cst_8 = arith.constant 1.000000e+00 : f32
    %12 = vector.broadcast %cst_8 : f32 to vector<16x128xf32>
    %13 = arith.addf %12, %11 : vector<16x128xf32>
    %14 = arith.mulf %9, %13 : vector<16x128xf32>
    %cst_9 = arith.constant 5.000000e-01 : f32
    %15 = vector.broadcast %cst_9 : f32 to vector<16x128xf32>
    %16 = arith.mulf %15, %6 : vector<16x128xf32>
    %17 = math.tanh %14 : vector<16x128xf32>
    %cst_10 = arith.constant 1.000000e+00 : f32
    %18 = vector.broadcast %cst_10 : f32 to vector<16x128xf32>
    %19 = arith.addf %18, %17 : vector<16x128xf32>
    %20 = arith.mulf %16, %19 : vector<16x128xf32>
    %c0_11 = arith.constant 0 : index
    %c0_12 = arith.constant 0 : index
    %21 = vector.load %arg4[%c0_11, %c0_12] : memref<128x32xf32, #tpu.memory_space<vmem>>, vector<128x32xf32>
    %cst_13 = arith.constant dense<0.000000e+00> : vector<16x32xf32>
    %22 = tpu.matmul %20, %21, %cst_13 {dimension_numbers = #tpu.dot_dimension_numbers<[1], [0], [0], [1], [0, 0, 1, 1], [], []>} : vector<16x128xf32>, vector<128x32xf32>, vector<16x32xf32> -> vector<16x32xf32>
    %23 = arith.addf %1, %22 : vector<16x32xf32>
    %c0_14 = arith.constant 0 : index
    %c0_15 = arith.constant 0 : index
    %24 = vector.load %arg5[%c0_14, %c0_15] : memref<1x32xf32, #tpu.memory_space<vmem>>, vector<1x32xf32>
    %25 = vector.broadcast %24 : vector<1x32xf32> to vector<16x32xf32>
    %26 = arith.addf %23, %25 : vector<16x32xf32>
    %c0_16 = arith.constant 0 : index
    %c0_17 = arith.constant 0 : index
    %27 = vector.load %arg6[%c0_16, %c0_17] : memref<16x32xf32, #tpu.memory_space<vmem>>, vector<16x32xf32>
    tpu.vector_store %arg6[%c0_16, %c0_17], %26 {strides = array<i32>} : memref<16x32xf32, #tpu.memory_space<vmem>>, vector<16x32xf32>,
    return
  }
  func.func @transform_0(%arg0: i32) -> (i32, i32) {
    %c0_i32 = arith.constant 0 : i32
    %c0_i32_0 = arith.constant 0 : i32
    return %arg0, %c0_i32 : i32, i32
  }
  func.func @transform_1(%arg0: i32) -> (i32, i32) {
    %c0_i32 = arith.constant 0 : i32
    %c0_i32_0 = arith.constant 0 : i32
    %c0_i32_1 = arith.constant 0 : i32
    return %c0_i32, %c0_i32_0 : i32, i32
  }
  func.func @transform_2(%arg0: i32) -> (i32, i32) {
    %c0_i32 = arith.constant 0 : i32
    %c0_i32_0 = arith.constant 0 : i32
    %c0_i32_1 = arith.constant 0 : i32
    return %c0_i32, %c0_i32_0 : i32, i32
  }
  func.func @transform_3(%arg0: i32) -> (i32, i32) {
    %c0_i32 = arith.constant 0 : i32
    %c0_i32_0 = arith.constant 0 : i32
    %c0_i32_1 = arith.constant 0 : i32
    return %c0_i32, %c0_i32_0 : i32, i32
  }
  func.func @transform_4(%arg0: i32) -> (i32, i32) {
    %c0_i32 = arith.constant 0 : i32
    %c0_i32_0 = arith.constant 0 : i32
    %c0_i32_1 = arith.constant 0 : i32
    return %c0_i32, %c0_i32_0 : i32, i32
  }
  func.func @transform_5(%arg0: i32) -> (i32, i32) {
    %c0_i32 = arith.constant 0 : i32
    %c0_i32_0 = arith.constant 0 : i32
    return %arg0, %c0_i32 : i32, i32
  }
}

</mosaic_0001>

<llo_original>
// kernel: tpu_custom_call.1
$region0: #{tpu_custom_call.1}
  #allocation0 [shape = 'u32[]', space=smem, size = 0x4, offset = 0x4, fixed_abs, tag = 'smem constant byte address 0x4 - core index']
  #allocation1 [shape = 'u32[144,128]{1,0:T(1,128)}', space=vmem, size = 0x12000, scoped, tag = 'internal scratch']
  %s0 = inlined_call_operand.hbm [shape: f32[16,32], index: 0, kind: input, shape index: {}]
  %s1 = inlined_call_operand.hbm [shape: f32[32,128], index: 1, kind: input, shape index: {}]
  %s2 = inlined_call_operand.hbm [shape: f32[1,128], index: 2, kind: input, shape index: {}]
  %s3 = inlined_call_operand.hbm [shape: f32[128,32], index: 3, kind: input, shape index: {}]
  %s4 = inlined_call_operand.hbm [shape: f32[1,32], index: 4, kind: input, shape index: {}]
  %s5 = inlined_call_operand.hbm [shape: f32[16,32], index: 5, kind: output, shape index: {}]
  %s6 = sld [smem:[#allocation0]]
  $region50: #{tpu_custom_call.1} parent=0
    _
  %s8 = ssub.s32 1, %s6
  %s9 = scalar_select 0, %s8, %s6
  $region1: #{tpu_custom_call.1} parent=0
    #allocation2 [shape = 'u8[8192]{0}', space=vmem, size = 0x2000, scoped, tag = 'input window, operand 0, single buffered']
    #allocation3 [shape = 's32[1]{0}', space=sflag, size = 0x4, scoped, tag = 'scoped memory for tpu_custom_call.1']
    #allocation4 [shape = 's32[1]{0}', space=sflag, size = 0x4, scoped, tag = 'scoped memory for tpu_custom_call.1']
    #allocation5 [shape = 'u8[16384]{0}', space=vmem, size = 0x4000, scoped, tag = 'input window, operand 1, single buffered']
    #allocation6 [shape = 's32[1]{0}', space=sflag, size = 0x4, scoped, tag = 'scoped memory for tpu_custom_call.1']
    #allocation7 [shape = 'u8[512]{0}', space=vmem, size = 0x400, scoped, tag = 'input window, operand 2, single buffered']
    #allocation8 [shape = 'u8[65536]{0}', space=vmem, size = 0x10000, scoped, tag = 'input window, operand 3, single buffered']
    #allocation9 [shape = 's32[1]{0}', space=sflag, size = 0x4, scoped, tag = 'scoped memory for tpu_custom_call.1']
    #allocation10 [shape = 'u8[512]{0}', space=vmem, size = 0x400, scoped, tag = 'input window, operand 4, single buffered']
    #allocation11 [shape = 'u8[8192]{0}', space=vmem, size = 0x2000, scoped, tag = 'output window, operand 0, single buffered']
    %10 = vsyncpa [#allocation3], 0
    %11 = vsyncpa [#allocation6], 0
    %12 = vsyncpa [#allocation9], 0
    %13 = vsyncpa [#allocation4], 0
    // Predicated region
    $region2: #{tpu_custom_call.1} parent=1 // pred_check
      _
    $region3: #{tpu_custom_call.1} parent=1 // pred_check_branch
      %15 = sbr.rel (0) target = $region5
    $region4: #{tpu_custom_call.1} parent=1 // pred_region
      %s17 = ssub.s32 256, 256
      %18 = vsyncadd [#allocation3], %s17
      %s19 = sshll.u32 [#allocation2], 4
      %s20 = int_to_ptr.vmem [resolvable:$true] %s19
      %25 = dma.hbm_to_vmem [thread:$0]  %s0, 256, %s20, [#allocation3], 128, 128, 8
    $region5: #{tpu_custom_call.1} parent=1 // pred_fallthru
      _
    // Predicated region
    $region6: #{tpu_custom_call.1} parent=1 // pred_check
      _
    $region7: #{tpu_custom_call.1} parent=1 // pred_check_branch
      %27 = sbr.rel (0) target = $region9
    $region8: #{tpu_custom_call.1} parent=1 // pred_region
      %s29 = ssub.s32 512, 512
      %30 = vsyncadd [#allocation6], %s29
      %s31 = sshll.u32 [#allocation5], 4
      %s32 = int_to_ptr.vmem [resolvable:$true] %s31
      %37 = dma.hbm_to_vmem [thread:$0]  %s1, 512, %s32, [#allocation6], 128, 128, 8
    $region9: #{tpu_custom_call.1} parent=1 // pred_fallthru
      _
    // Predicated region
    $region10: #{tpu_custom_call.1} parent=1 // pred_check
      _
    $region11: #{tpu_custom_call.1} parent=1 // pred_check_branch
      %39 = sbr.rel (0) target = $region13
    $region12: #{tpu_custom_call.1} parent=1 // pred_region
      %s41 = ssub.s32 16, 16
      %42 = vsyncadd [#allocation6], %s41
      %s44 = sshll.u32 [#allocation7], 4
      %s45 = int_to_ptr.vmem [resolvable:$true] %s44
      %47 = dma.hbm_to_vmem [thread:$0]  %s2, 16, %s45, [#allocation6]
    $region13: #{tpu_custom_call.1} parent=1 // pred_fallthru
      _
    // Predicated region
    $region14: #{tpu_custom_call.1} parent=1 // pred_check
      _
    $region15: #{tpu_custom_call.1} parent=1 // pred_check_branch
      %49 = sbr.rel (0) target = $region17
    $region16: #{tpu_custom_call.1} parent=1 // pred_region
      %s51 = ssub.s32 2048, 2048
      %52 = vsyncadd [#allocation9], %s51
      %s53 = sshll.u32 [#allocation8], 4
      %s54 = int_to_ptr.vmem [resolvable:$true] %s53
      %59 = dma.hbm_to_vmem [thread:$0]  %s3, 2048, %s54, [#allocation9], 128, 128, 8
    $region17: #{tpu_custom_call.1} parent=1 // pred_fallthru
      _
    // Predicated region
    $region18: #{tpu_custom_call.1} parent=1 // pred_check
      _
    $region19: #{tpu_custom_call.1} parent=1 // pred_check_branch
      %61 = sbr.rel (0) target = $region21
    $region20: #{tpu_custom_call.1} parent=1 // pred_region
      %s63 = ssub.s32 16, 16
      %64 = vsyncadd [#allocation9], %s63
      %s66 = sshll.u32 [#allocation10], 4
      %s67 = int_to_ptr.vmem [resolvable:$true] %s66
      %69 = dma.hbm_to_vmem [thread:$0]  %s4, 16, %s67, [#allocation9]
    $region21: #{tpu_custom_call.1} parent=1 // pred_fallthru
      _
    // Predicated region
    $region22: #{tpu_custom_call.1} parent=1 // pred_check
      _
    $region23: #{tpu_custom_call.1} parent=1 // pred_check_branch
      %71 = sbr.rel (0) target = $region25
    $region24: #{tpu_custom_call.1} parent=1 // pred_region
      %72 = dma.done [#allocation3], 256
    $region25: #{tpu_custom_call.1} parent=1 // pred_fallthru
      _
    // Predicated region
    $region26: #{tpu_custom_call.1} parent=1 // pred_check
      _
    $region27: #{tpu_custom_call.1} parent=1 // pred_check_branch
      %74 = sbr.rel (0) target = $region29
    $region28: #{tpu_custom_call.1} parent=1 // pred_region
      %75 = dma.done [#allocation6], 512
    $region29: #{tpu_custom_call.1} parent=1 // pred_fallthru
      _
    // Predicated region
    $region30: #{tpu_custom_call.1} parent=1 // pred_check
      _
    $region31: #{tpu_custom_call.1} parent=1 // pred_check_branch
      %77 = sbr.rel (0) target = $region33
    $region32: #{tpu_custom_call.1} parent=1 // pred_region
      %78 = dma.done [#allocation6], 16
    $region33: #{tpu_custom_call.1} parent=1 // pred_fallthru
      _
    // Predicated region
    $region34: #{tpu_custom_call.1} parent=1 // pred_check
      _
    $region35: #{tpu_custom_call.1} parent=1 // pred_check_branch
      %80 = sbr.rel (0) target = $region37
    $region36: #{tpu_custom_call.1} parent=1 // pred_region
      %81 = dma.done [#allocation9], 2048
    $region37: #{tpu_custom_call.1} parent=1 // pred_fallthru
      _
    // Predicated region
    $region38: #{tpu_custom_call.1} parent=1 // pred_check
      _
    $region39: #{tpu_custom_call.1} parent=1 // pred_check_branch
      %83 = sbr.rel (0) target = $region41
    $region40: #{tpu_custom_call.1} parent=1 // pred_region
      %84 = dma.done [#allocation9], 16
    $region41: #{tpu_custom_call.1} parent=1 // pred_fallthru
      _
    %v85 = vld [vmem:[#allocation2] sm:$0xff]
    %v86 = vld [vmem:[#allocation2 + $0x8] sm:$0xff]
    %v87 = vld [vmem:[#allocation5] sm:$0xff]
    %v88 = vld [vmem:[#allocation5 + $0x8] sm:$0xff]
    %v89 = vld [vmem:[#allocation5 + $0x10] sm:$0xff]
    %v90 = vld [vmem:[#allocation5 + $0x18] sm:$0xff]
    %v91 = vld [vmem:[#allocation7] sm:$0x1]
    %v93 = vlaneseq
    %v94 = vshrl.u32 %v93, 7
    %v95 = vsub.s32 0, %v94
    %v96 = vrot.slane %v91, %v95
    %vm98 = vcmask 261120
    %v100 = vsel %vm98, %v85, 0
    %v103 = vsel %vm98, %v86, 0
    %105 = vmatprep.subr.mxu0 0.0
    %106 = vmatpush1.msra.mxu0 %v87
    %107 = vmatprep.subr.mxu0 0.0
    %108 = vmatpush1.msra.mxu0 %v88
    %109 = vmatprep.subr.mxu0 0.0
    %110 = vmatpush1.msra.mxu0 %v89
    %111 = vmatprep.subr.mxu0 0.0
    %112 = vmatpush1.msra.mxu0 %v90
    %113 = vmatprep.subr.mxu0 0.0
    %114 = vmatpush1.msra.mxu0 0.0
    %115 = vmatprep.subr.mxu0 0.0
    %116 = vmatpush1.msra.mxu0 0.0
    %117 = vmatprep.subr.mxu0 0.0
    %118 = vmatpush1.msra.mxu0 0.0
    %119 = vmatprep.subr.mxu0 0.0
    %120 = vmatpush1.msra.mxu0 0.0
    %121 = vmatprep.subr.mxu0 0.0
    %122 = vmatpush1.msra.mxu0 0.0
    %123 = vmatprep.subr.mxu0 0.0
    %124 = vmatpush1.msra.mxu0 0.0
    %125 = vmatprep.subr.mxu0 0.0
    %126 = vmatpush1.msra.mxu0 0.0
    %127 = vmatprep.subr.mxu0 0.0
    %128 = vmatpush1.msra.mxu0 0.0
    %129 = vmatprep.subr.mxu0 0.0
    %130 = vmatpush1.msra.mxu0 0.0
    %131 = vmatprep.subr.mxu0 0.0
    %132 = vmatpush1.msra.mxu0 0.0
    %133 = vmatprep.subr.mxu0 0.0
    %134 = vmatpush1.msra.mxu0 0.0
    %135 = vmatprep.subr.mxu0 0.0
    %136 = vmatpush1.msra.mxu0 0.0
    %137 = vmatprep.subr.mxu0 0.0
    %138 = vmatpush1.msra.mxu0 0.0
    %139 = vmatprep.subr.mxu0 0.0
    %140 = vmatpush1.msra.mxu0 0.0
    %141 = vmatprep.subr.mxu0 0.0
    %142 = vmatpush1.msra.mxu0 0.0
    %143 = vmatprep.subr.mxu0 0.0
    %144 = vmatpush1.msra.mxu0 0.0
    %145 = vmatprep.subr.mxu0 0.0
    %146 = vmatpush1.msra.mxu0 0.0
    %147 = vmatprep.subr.mxu0 0.0
    %148 = vmatpush1.msra.mxu0 0.0
    %149 = vmatprep.subr.mxu0 0.0
    %150 = vmatpush1.msra.mxu0 0.0
    %151 = vmatprep.subr.mxu0 0.0
    %152 = vmatpush1.msra.mxu0 0.0
    %153 = vmatprep.subr.mxu0 0.0
    %154 = vmatpush1.msra.mxu0 0.0
    %155 = vmatprep.subr.mxu0 0.0
    %156 = vmatpush1.msra.mxu0 0.0
    %157 = vmatprep.subr.mxu0 0.0
    %158 = vmatpush1.msra.mxu0 0.0
    %159 = vmatprep.subr.mxu0 0.0
    %160 = vmatpush1.msra.mxu0 0.0
    %161 = vmatprep.subr.mxu0 0.0
    %162 = vmatpush1.msra.mxu0 0.0
    %163 = vmatprep.subr.mxu0 0.0
    %164 = vmatpush1.msra.mxu0 0.0
    %165 = vmatprep.subr.mxu0 0.0
    %166 = vmatpush1.msra.mxu0 0.0
    %167 = vmatprep.subr.mxu0 0.0
    %168 = vmatpush1.msra.mxu0 0.0
    %169 = vmatprep.mubr.f32.mxu0 0.0
    %170 = vmatmul.mubr.f32.gmra.mrb[0].mxu0 %v100
    %v171 = vpop.f32.mrb[0].mxu0
    %v172 = vadd.f32 %v96, %v171
    %v173 = vpop.f32.mrb[0].mxu0
    %174 = vmatprep.mubr.f32.mxu0 0.0
    %175 = vmatmul.mubr.f32.gmra.mrb[0].mxu0 %v103
    %v176 = vpop.f32.mrb[0].mxu0
    %v177 = vadd.f32 %v96, %v176
    %v178 = vpop.f32.mrb[0].mxu0
    %179 = vdwg.mxu0
    %v180 = vmul.f32 %v172, %v172
    %v181 = vmul.f32 %v177, %v177
    %v182 = vmul.f32 %v172, 0.7978846
    %v183 = vmul.f32 %v177, 0.7978846
    %v184 = vmul.f32 %v180, 0.044715
    %v185 = vmul.f32 %v181, 0.044715
    %v186 = vadd.f32 %v184, 1.0
    %v187 = vadd.f32 %v185, 1.0
    %v188 = vmul.f32 %v182, %v186
    %v189 = vmul.f32 %v183, %v187
    %v190 = vmul.f32 %v172, 0.5
    %v191 = vmul.f32 %v177, 0.5
    %v192 = vtanh.pop %v188
    %v193 = vtanh.pop %v189
    %v194 = vadd.f32 %v192, 1.0
    %v195 = vadd.f32 %v193, 1.0
    %v196 = vmul.f32 %v190, %v194
    %v197 = vmul.f32 %v191, %v195
    %v198 = vld [vmem:[#allocation8] sm:$0xff]
    %v199 = vld [vmem:[#allocation8 + $0x8] sm:$0xff]
    %v200 = vld [vmem:[#allocation8 + $0x10] sm:$0xff]
    %v201 = vld [vmem:[#allocation8 + $0x18] sm:$0xff]
    %v202 = vld [vmem:[#allocation8 + $0x20] sm:$0xff]
    %v203 = vld [vmem:[#allocation8 + $0x28] sm:$0xff]
    %v204 = vld [vmem:[#allocation8 + $0x30] sm:$0xff]
    %v205 = vld [vmem:[#allocation8 + $0x38] sm:$0xff]
    %v206 = vld [vmem:[#allocation8 + $0x40] sm:$0xff]
    %v207 = vld [vmem:[#allocation8 + $0x48] sm:$0xff]
    %v208 = vld [vmem:[#allocation8 + $0x50] sm:$0xff]
    %v209 = vld [vmem:[#allocation8 + $0x58] sm:$0xff]
    %v210 = vld [vmem:[#allocation8 + $0x60] sm:$0xff]
    %v211 = vld [vmem:[#allocation8 + $0x68] sm:$0xff]
    %v212 = vld [vmem:[#allocation8 + $0x70] sm:$0xff]
    %v213 = vld [vmem:[#allocation8 + $0x78] sm:$0xff]
    %v214 = vld [vmem:[#allocation10] sm:$0x1]
    %v216 = vlaneseq
    %v217 = vshrl.u32 %v216, 7
    %v218 = vsub.s32 0, %v217
    %v219 = vrot.slane %v214, %v218
    %221 = vmatprep.subr.mxu0 0.0
    %222 = vmatpush1.msra.mxu0 %v198
    %223 = vmatprep.subr.mxu0 0.0
    %224 = vmatpush1.msra.mxu0 %v199
    %225 = vmatprep.subr.mxu0 0.0
    %226 = vmatpush1.msra.mxu0 %v200
    %227 = vmatprep.subr.mxu0 0.0
    %228 = vmatpush1.msra.mxu0 %v201
    %229 = vmatprep.subr.mxu0 0.0
    %230 = vmatpush1.msra.mxu0 %v202
    %231 = vmatprep.subr.mxu0 0.0
    %232 = vmatpush1.msra.mxu0 %v203
    %233 = vmatprep.subr.mxu0 0.0
    %234 = vmatpush1.msra.mxu0 %v204
    %235 = vmatprep.subr.mxu0 0.0
    %236 = vmatpush1.msra.mxu0 %v205
    %237 = vmatprep.subr.mxu0 0.0
    %238 = vmatpush1.msra.mxu0 %v206
    %239 = vmatprep.subr.mxu0 0.0
    %240 = vmatpush1.msra.mxu0 %v207
    %241 = vmatprep.subr.mxu0 0.0
    %242 = vmatpush1.msra.mxu0 %v208
    %243 = vmatprep.subr.mxu0 0.0
    %244 = vmatpush1.msra.mxu0 %v209
    %245 = vmatprep.subr.mxu0 0.0
    %246 = vmatpush1.msra.mxu0 %v210
    %247 = vmatprep.subr.mxu0 0.0
    %248 = vmatpush1.msra.mxu0 %v211
    %249 = vmatprep.subr.mxu0 0.0
    %250 = vmatpush1.msra.mxu0 %v212
    %251 = vmatprep.subr.mxu0 0.0
    %252 = vmatpush1.msra.mxu0 %v213
    %253 = vmatprep.subr.mxu0 0.0
    %254 = vmatpush1.msra.mxu0 0.0
    %255 = vmatprep.subr.mxu0 0.0
    %256 = vmatpush1.msra.mxu0 0.0
    %257 = vmatprep.subr.mxu0 0.0
    %258 = vmatpush1.msra.mxu0 0.0
    %259 = vmatprep.subr.mxu0 0.0
    %260 = vmatpush1.msra.mxu0 0.0
    %261 = vmatprep.subr.mxu0 0.0
    %262 = vmatpush1.msra.mxu0 0.0
    %263 = vmatprep.subr.mxu0 0.0
    %264 = vmatpush1.msra.mxu0 0.0
    %265 = vmatprep.subr.mxu0 0.0
    %266 = vmatpush1.msra.mxu0 0.0
    %267 = vmatprep.subr.mxu0 0.0
    %268 = vmatpush1.msra.mxu0 0.0
    %269 = vmatprep.subr.mxu0 0.0
    %270 = vmatpush1.msra.mxu0 0.0
    %271 = vmatprep.subr.mxu0 0.0
    %272 = vmatpush1.msra.mxu0 0.0
    %273 = vmatprep.subr.mxu0 0.0
    %274 = vmatpush1.msra.mxu0 0.0
    %275 = vmatprep.subr.mxu0 0.0
    %276 = vmatpush1.msra.mxu0 0.0
    %277 = vmatprep.subr.mxu0 0.0
    %278 = vmatpush1.msra.mxu0 0.0
    %279 = vmatprep.subr.mxu0 0.0
    %280 = vmatpush1.msra.mxu0 0.0
    %281 = vmatprep.subr.mxu0 0.0
    %282 = vmatpush1.msra.mxu0 0.0
    %283 = vmatprep.subr.mxu0 0.0
    %284 = vmatpush1.msra.mxu0 0.0
    %285 = vmatprep.mubr.f32.mxu0 0.0
    %286 = vmatmul.mubr.f32.gmra.mrb[0].mxu0 %v196
    %v287 = vpop.f32.mrb[0].mxu0
    %v288 = vadd.f32 %v219, %v287
    %v289 = vpop.f32.mrb[0].mxu0
    %290 = vmatprep.mubr.f32.mxu0 0.0
    %291 = vmatmul.mubr.f32.gmra.mrb[0].mxu0 %v197
    %v292 = vpop.f32.mrb[0].mxu0
    %v293 = vadd.f32 %v219, %v292
    %v294 = vpop.f32.mrb[0].mxu0
    %295 = vdwg.mxu0
    %296 = vst.msk [vmem:[#allocation11] sm:$0xff] %vm98, %v288
    %297 = vst.msk [vmem:[#allocation11 + $0x8] sm:$0xff] %vm98, %v293
    // Predicated region
    $region42: #{tpu_custom_call.1} parent=1 // pred_check
      _
    $region43: #{tpu_custom_call.1} parent=1 // pred_check_branch
      %299 = sbr.rel (0) target = $region45
    $region44: #{tpu_custom_call.1} parent=1 // pred_region
      %s301 = ssub.s32 256, 256
      %302 = vsyncadd [#allocation4], %s301
      %s303 = sshll.u32 [#allocation11], 4
      %s304 = int_to_ptr.vmem [resolvable:$true] %s303
      %309 = dma.vmem_to_hbm [thread:$0]  %s304, 256, %s5, [#allocation4], 128, 128, 8
    $region45: #{tpu_custom_call.1} parent=1 // pred_fallthru
      _
    // Predicated region
    $region46: #{tpu_custom_call.1} parent=1 // pred_check
      _
    $region47: #{tpu_custom_call.1} parent=1 // pred_check_branch
      %311 = sbr.rel (0) target = $region49
    $region48: #{tpu_custom_call.1} parent=1 // pred_region
      %312 = dma.done [#allocation4], 256
    $region49: #{tpu_custom_call.1} parent=1 // pred_fallthru
      _
    %313 = vsyncpa [#allocation3], 1
    %314 = vsyncpa [#allocation6], 1
    %315 = vsyncpa [#allocation9], 1
    %316 = vsyncpa [#allocation4], 1

</llo_original>
